<compile_context>
chip_gen: v7x
topology: tpu7x:2x2x1
jax: 0.10.0
libtpu: 0.0.40
codegen_flags: <defaults>
</compile_context>

<pallas_src>
import jax
import jax.numpy as jnp
from jax.experimental import pallas as pl
from jax.experimental.pallas import tpu as pltpu


FEAT_IN = 8          # 4 complex inputs -> 8 real features
HIDDEN = 128
OUT_REAL = 362       # 181 complex outputs -> 362 real features
OUT_PAD = 384        # next multiple of 128 (lane-dense loads/stores)
N_CPLX_OUT = 181


def mlp_kernel(x_ref, w1_ref, b1_ref, w2_ref, b2_ref, o_ref):
    # x_ref : (TB, 8)      de-interleaved real features [reals | imags]
    # w1_ref: (8, 128)     fc1 weight, transposed + column-permuted
    # b1_ref: (1, 128)
    # w2_ref: (128, 384)   fc2 weight, transposed, zero-padded (torch row order)
    # b2_ref: (1, 384)
    # o_ref : (TB, 384)    interleaved [r0,i0,...,r180,i180 | 22 zero-pad]
    x = x_ref[...]
    h = jnp.dot(x, w1_ref[...], preferred_element_type=jnp.float32) + b1_ref[...]
    h = jnp.maximum(h, 0.0)
    y = jnp.dot(h, w2_ref[...], preferred_element_type=jnp.float32) + b2_ref[...]
    o_ref[...] = y.astype(o_ref.dtype)


def _round_up(x, m):
    return ((x + m - 1) // m) * m


def complex_network_forward(x_complex, w1, b1, w2, b2, *, max_block_b=4096):
    """x_complex: (B, 4) complex64.  Returns (B, 181) complex64.

    w1: (128, 8), b1: (128,), w2: (362, 128), b2: (362,)  -- torch layout
    (interleaved real/imag input columns, interleaved real/imag output rows).
    """
    B = x_complex.shape[0]

    # --- feature prep: plain concat, no stride-2 interleave ------------------
    # kernel input feature order: [r0,r1,r2,r3, i0,i1,i2,i3]
    x_real = jnp.concatenate(
        [jnp.real(x_complex), jnp.imag(x_complex)], axis=-1
    ).astype(jnp.float32)                                    # (B, 8)

    # --- one-time fc1 column permutation (compensates de-interleaved x) ------
    # torch input feature k: k even -> real(k//2), k odd -> imag(k//2)
    in_perm = jnp.concatenate([jnp.arange(0, FEAT_IN, 2),
                               jnp.arange(1, FEAT_IN, 2)])   # [0,2,4,6,1,3,5,7]
    w1_t = w1[:, in_perm].T                                  # (8, 128)
    b1_2d = b1.reshape(1, HIDDEN)                            # (1, 128)

    # --- fc2 stays in torch's interleaved [r,i] output order -----------------
    # (store is lane-dense either way; keeping torch order lets the wrapper
    # build complex64 from one contiguous reshape). Pad 362 -> 384 with zeros.
    w2_t = jnp.pad(w2.T, ((0, 0), (0, OUT_PAD - OUT_REAL)))        # (128, 384)
    b2_2d = jnp.pad(b2, (0, OUT_PAD - OUT_REAL)).reshape(1, OUT_PAD)

    # --- batch tiling: minimize pad rows, guarantee >=2 tiles on big batches -
    b_pad8 = _round_up(B, 8)
    max_tb = _round_up(max_block_b, 8)
    # v7x has 2 TensorCores: for large batches force at least 2 parallel tiles
    # so both cores get work; small batches keep a single tile (less overhead).
    min_tiles = 2 if b_pad8 >= 1024 else 1
    n_tiles = max(pl.cdiv(b_pad8, max_tb), min_tiles)
    TB = _round_up(pl.cdiv(b_pad8, n_tiles), 8)              # per-tile rows
    B_pad = n_tiles * TB                                     # < b_pad8 + 8*n_tiles
    if B_pad != B:
        x_real = jnp.pad(x_real, ((0, B_pad - B), (0, 0)))

    grid = (n_tiles,)

    # --- VMEM budget -> explicit scoped-VMEM limit ----------------------------
    # x block (TB, 8) lane-pads to 128 lanes; x/out blocks are double-buffered;
    # weights are tiny and VMEM-resident; h/(y) f32 intermediates live per tile.
    x_buf = TB * 128 * 4
    o_buf = TB * OUT_PAD * 4
    w_buf = 2 * 4 * (FEAT_IN * HIDDEN + HIDDEN + HIDDEN * OUT_PAD + OUT_PAD)
    interm = TB * (HIDDEN + OUT_PAD) * 4
    vmem_need = 2 * (x_buf + o_buf) + w_buf + interm
    # 1.5x headroom, clamp to [16 MiB, 48 MiB] (48 MiB < v7x's 64 MiB physical).
    vmem_limit = int(min(max(int(vmem_need * 1.5), 16 << 20), 48 << 20))

    flops = 2 * B_pad * (FEAT_IN * HIDDEN + HIDDEN * OUT_PAD)
    bytes_accessed = 4 * (B_pad * FEAT_IN + B_pad * OUT_PAD
                          + FEAT_IN * HIDDEN + HIDDEN
                          + HIDDEN * OUT_PAD + OUT_PAD)
    cost = pl.CostEstimate(flops=flops, transcendentals=0,
                           bytes_accessed=bytes_accessed)

    out = pl.pallas_call(
        mlp_kernel,
        out_shape=jax.ShapeDtypeStruct((B_pad, OUT_PAD), jnp.float32),
        grid_spec=pltpu.PrefetchScalarGridSpec(
            num_scalar_prefetch=0,
            grid=grid,
            in_specs=[
                # batch-tiled activations
                pl.BlockSpec((TB, FEAT_IN), lambda i: (i, 0)),
                # weights/biases: constant index_map -> DMA'd once, stay resident
                pl.BlockSpec((FEAT_IN, HIDDEN), lambda i: (0, 0)),
                pl.BlockSpec((1, HIDDEN), lambda i: (0, 0)),
                pl.BlockSpec((HIDDEN, OUT_PAD), lambda i: (0, 0)),
                pl.BlockSpec((1, OUT_PAD), lambda i: (0, 0)),
            ],
            out_specs=pl.BlockSpec((TB, OUT_PAD), lambda i: (i, 0)),
        ),
        compiler_params=pltpu.CompilerParams(
            dimension_semantics=("parallel",),   # batch tiles shard across TCs (v7x)
            vmem_limit_bytes=vmem_limit,
        ),
        cost_estimate=cost,
    )(x_real, w1_t, b1_2d, w2_t, b2_2d)

    # One contiguous pass: interleaved [r,i] pairs -> complex64 (view_as_complex).
    out_pairs = out[:B, :OUT_REAL].reshape(B, N_CPLX_OUT, 2)
    return jax.lax.complex(out_pairs[..., 0], out_pairs[..., 1])


def init_params(key):
    """Deterministic init mimicking nn.Linear's uniform(-1/sqrt(fan_in), +...)."""
    k1, k2, k3, k4 = jax.random.split(key, 4)
    bound1 = 1.0 / jnp.sqrt(8.0)
    w1 = jax.random.uniform(k1, (128, 8), jnp.float32, -bound1, bound1)
    b1 = jax.random.uniform(k2, (128,), jnp.float32, -bound1, bound1)
    bound2 = 1.0 / jnp.sqrt(128.0)
    w2 = jax.random.uniform(k3, (362, 128), jnp.float32, -bound2, bound2)
    b2 = jax.random.uniform(k4, (362,), jnp.float32, -bound2, bound2)
    return w1, b1, w2, b2


if __name__ == "__main__":
    key = jax.random.PRNGKey(0)
    kp, kx_r, kx_i = jax.random.split(key, 3)

    w1, b1, w2, b2 = init_params(kp)

    B = 2  # batch
    x_real_part = jax.random.normal(kx_r, (B, 4), jnp.float32)
    x_imag_part = jax.random.normal(kx_i, (B, 4), jnp.float32)
    x = jax.lax.complex(x_real_part, x_imag_part)  # (B, 4) complex64

    out = complex_network_forward(x, w1, b1, w2, b2)
    out = jax.block_until_ready(out)

    # Pure-JAX reference (original torch semantics: interleaved real/imag)
    x_flat = jnp.stack([jnp.real(x), jnp.imag(x)], axis=-1).reshape(B, -1)
    ref = jnp.maximum(x_flat @ w1.T + b1, 0.0) @ w2.T + b2
    ref = ref.reshape(B, 181, 2)
    ref = jax.lax.complex(ref[..., 0], ref[..., 1])

    assert out.shape == (B, 181) and out.dtype == jnp.complex64
    assert jnp.allclose(out, ref, atol=1e-4, rtol=1e-4)

    print("KERNEL_OK")
</pallas_src>

<mosaic_0001>
module attributes {stable_mosaic.version = 11 : i64} {
  func.func @mlp_kernel(%arg0: i32, %arg1: memref<8x8xf32, #tpu.memory_space<vmem>>, %arg2: memref<8x128xf32, #tpu.memory_space<vmem>>, %arg3: memref<1x128xf32, #tpu.memory_space<vmem>>, %arg4: memref<128x384xf32, #tpu.memory_space<vmem>>, %arg5: memref<1x384xf32, #tpu.memory_space<vmem>>, %arg6: memref<8x384xf32, #tpu.memory_space<vmem>>) attributes {dimension_semantics = [#tpu.dimension_semantics<parallel>], iteration_bounds = array<i64: 1>, scalar_prefetch = 0 : i64, scratch_operands = 0 : i64, tpu.core_type = #tpu.core_type<tc>, window_params = [{transform_indices = @transform_0, window_bounds = array<i64: 8, 8>}, {pipeline_mode = #tpu.pipeline_mode<synchronous>, transform_indices = @transform_1, window_bounds = array<i64: 8, 128>}, {pipeline_mode = #tpu.pipeline_mode<synchronous>, transform_indices = @transform_2, window_bounds = array<i64: 1, 128>}, {pipeline_mode = #tpu.pipeline_mode<synchronous>, transform_indices = @transform_3, window_bounds = array<i64: 128, 384>}, {pipeline_mode = #tpu.pipeline_mode<synchronous>, transform_indices = @transform_4, window_bounds = array<i64: 1, 384>}, {transform_indices = @transform_5, window_bounds = array<i64: 8, 384>}]} {
    %c0 = arith.constant 0 : index
    %c0_0 = arith.constant 0 : index
    %0 = vector.load %arg1[%c0, %c0_0] : memref<8x8xf32, #tpu.memory_space<vmem>>, vector<8x8xf32>
    %c0_1 = arith.constant 0 : index
    %c0_2 = arith.constant 0 : index
    %1 = vector.load %arg2[%c0_1, %c0_2] : memref<8x128xf32, #tpu.memory_space<vmem>>, vector<8x128xf32>
    %cst = arith.constant dense<0.000000e+00> : vector<8x128xf32>
    %2 = tpu.matmul %0, %1, %cst {dimension_numbers = #tpu.dot_dimension_numbers<[1], [0], [0], [1], [0, 0, 1, 1], [], []>} : vector<8x8xf32>, vector<8x128xf32>, vector<8x128xf32> -> vector<8x128xf32>
    %c0_3 = arith.constant 0 : index
    %c0_4 = arith.constant 0 : index
    %3 = vector.load %arg3[%c0_3, %c0_4] : memref<1x128xf32, #tpu.memory_space<vmem>>, vector<1x128xf32>
    %4 = vector.broadcast %3 : vector<1x128xf32> to vector<8x128xf32>
    %5 = arith.addf %2, %4 : vector<8x128xf32>
    %cst_5 = arith.constant 0.000000e+00 : f32
    %6 = vector.broadcast %cst_5 : f32 to vector<8x128xf32>
    %7 = arith.maximumf %5, %6 : vector<8x128xf32>
    %c0_6 = arith.constant 0 : index
    %c0_7 = arith.constant 0 : index
    %8 = vector.load %arg4[%c0_6, %c0_7] : memref<128x384xf32, #tpu.memory_space<vmem>>, vector<128x384xf32>
    %cst_8 = arith.constant dense<0.000000e+00> : vector<8x384xf32>
    %9 = tpu.matmul %7, %8, %cst_8 {dimension_numbers = #tpu.dot_dimension_numbers<[1], [0], [0], [1], [0, 0, 1, 1], [], []>} : vector<8x128xf32>, vector<128x384xf32>, vector<8x384xf32> -> vector<8x384xf32>
    %c0_9 = arith.constant 0 : index
    %c0_10 = arith.constant 0 : index
    %10 = vector.load %arg5[%c0_9, %c0_10] : memref<1x384xf32, #tpu.memory_space<vmem>>, vector<1x384xf32>
    %11 = vector.broadcast %10 : vector<1x384xf32> to vector<8x384xf32>
    %12 = arith.addf %9, %11 : vector<8x384xf32>
    %c0_11 = arith.constant 0 : index
    %c0_12 = arith.constant 0 : index
    %13 = vector.load %arg6[%c0_11, %c0_12] : memref<8x384xf32, #tpu.memory_space<vmem>>, vector<8x384xf32>
    tpu.vector_store %arg6[%c0_11, %c0_12], %12 {strides = array<i32>} : memref<8x384xf32, #tpu.memory_space<vmem>>, vector<8x384xf32>,
    return
  }
  func.func @transform_0(%arg0: i32) -> (i32, i32) {
    %c0_i32 = arith.constant 0 : i32
    %c0_i32_0 = arith.constant 0 : i32
    return %arg0, %c0_i32 : i32, i32
  }
  func.func @transform_1(%arg0: i32) -> (i32, i32) {
    %c0_i32 = arith.constant 0 : i32
    %c0_i32_0 = arith.constant 0 : i32
    %c0_i32_1 = arith.constant 0 : i32
    return %c0_i32, %c0_i32_0 : i32, i32
  }
  func.func @transform_2(%arg0: i32) -> (i32, i32) {
    %c0_i32 = arith.constant 0 : i32
    %c0_i32_0 = arith.constant 0 : i32
    %c0_i32_1 = arith.constant 0 : i32
    return %c0_i32, %c0_i32_0 : i32, i32
  }
  func.func @transform_3(%arg0: i32) -> (i32, i32) {
    %c0_i32 = arith.constant 0 : i32
    %c0_i32_0 = arith.constant 0 : i32
    %c0_i32_1 = arith.constant 0 : i32
    return %c0_i32, %c0_i32_0 : i32, i32
  }
  func.func @transform_4(%arg0: i32) -> (i32, i32) {
    %c0_i32 = arith.constant 0 : i32
    %c0_i32_0 = arith.constant 0 : i32
    %c0_i32_1 = arith.constant 0 : i32
    return %c0_i32, %c0_i32_0 : i32, i32
  }
  func.func @transform_5(%arg0: i32) -> (i32, i32) {
    %c0_i32 = arith.constant 0 : i32
    %c0_i32_0 = arith.constant 0 : i32
    return %arg0, %c0_i32 : i32, i32
  }
}

</mosaic_0001>

<llo_original>
// kernel: tpu_custom_call.1
$region0: #{tpu_custom_call.1}
  #allocation0 [shape = 'u32[]', space=smem, size = 0x4, offset = 0x4, fixed_abs, tag = 'smem constant byte address 0x4 - core index']
  #allocation1 [shape = 'u32[144,128]{1,0:T(1,128)}', space=vmem, size = 0x12000, scoped, tag = 'internal scratch']
  %s0 = inlined_call_operand.hbm [shape: f32[8,8], index: 0, kind: input, shape index: {}]
  %s1 = inlined_call_operand.hbm [shape: f32[8,128], index: 1, kind: input, shape index: {}]
  %s2 = inlined_call_operand.vmem [shape: f32[1,128], index: 2, kind: input, shape index: {}]
  %s3 = inlined_call_operand.hbm [shape: f32[128,384], index: 3, kind: input, shape index: {}]
  %s4 = inlined_call_operand.vmem [shape: f32[1,384], index: 4, kind: input, shape index: {}]
  %s5 = inlined_call_operand.hbm [shape: f32[8,384], index: 5, kind: output, shape index: {}]
  %s6 = sld [smem:[#allocation0]]
  $region42: #{tpu_custom_call.1} parent=0
    _
  %s8 = ssub.s32 1, %s6
  %s9 = scalar_select 0, %s8, %s6
  $region1: #{tpu_custom_call.1} parent=0
    #allocation2 [shape = 'u8[4096]{0}', space=vmem, size = 0x1000, scoped, tag = 'input window, operand 0, single buffered']
    #allocation3 [shape = 's32[1]{0}', space=sflag, size = 0x4, scoped, tag = 'scoped memory for tpu_custom_call.1']
    #allocation4 [shape = 's32[1]{0}', space=sflag, size = 0x4, scoped, tag = 'scoped memory for tpu_custom_call.1']
    #allocation5 [shape = 'u8[4096]{0}', space=vmem, size = 0x1000, scoped, tag = 'input window, operand 1, single buffered']
    #allocation6 [shape = 's32[1]{0}', space=sflag, size = 0x4, scoped, tag = 'scoped memory for tpu_custom_call.1']
    #allocation7 [shape = 'u8[196608]{0}', space=vmem, size = 0x30000, scoped, tag = 'input window, operand 3, single buffered']
    #allocation8 [shape = 'u8[12288]{0}', space=vmem, size = 0x3000, scoped, tag = 'output window, operand 0, single buffered']
    %10 = vsyncpa [#allocation3], 0
    %11 = vsyncpa [#allocation6], 0
    %12 = vsyncpa [#allocation4], 0
    // Predicated region
    $region2: #{tpu_custom_call.1} parent=1 // pred_check
      _
    $region3: #{tpu_custom_call.1} parent=1 // pred_check_branch
      %14 = sbr.rel (0) target = $region5
    $region4: #{tpu_custom_call.1} parent=1 // pred_region
      %s16 = ssub.s32 128, 128
      %17 = vsyncadd [#allocation3], %s16
      %s19 = sshll.u32 [#allocation2], 4
      %s20 = int_to_ptr.vmem [resolvable:$true] %s19
      %22 = dma.hbm_to_vmem [thread:$0]  %s0, 128, %s20, [#allocation3]
    $region5: #{tpu_custom_call.1} parent=1 // pred_fallthru
      _
    // Predicated region
    $region6: #{tpu_custom_call.1} parent=1 // pred_check
      _
    $region7: #{tpu_custom_call.1} parent=1 // pred_check_branch
      %24 = sbr.rel (0) target = $region9
    $region8: #{tpu_custom_call.1} parent=1 // pred_region
      %s26 = ssub.s32 128, 128
      %27 = vsyncadd [#allocation6], %s26
      %s29 = sshll.u32 [#allocation5], 4
      %s30 = int_to_ptr.vmem [resolvable:$true] %s29
      %32 = dma.hbm_to_vmem [thread:$0]  %s1, 128, %s30, [#allocation6]
    $region9: #{tpu_custom_call.1} parent=1 // pred_fallthru
      _
    // Predicated region
    $region10: #{tpu_custom_call.1} parent=1 // pred_check
      _
    $region11: #{tpu_custom_call.1} parent=1 // pred_check_branch
      %34 = sbr.rel (0) target = $region13
    $region12: #{tpu_custom_call.1} parent=1 // pred_region
      _
    $region13: #{tpu_custom_call.1} parent=1 // pred_fallthru
      _
    // Predicated region
    $region14: #{tpu_custom_call.1} parent=1 // pred_check
      _
    $region15: #{tpu_custom_call.1} parent=1 // pred_check_branch
      %36 = sbr.rel (0) target = $region17
    $region16: #{tpu_custom_call.1} parent=1 // pred_region
      %s38 = ssub.s32 6144, 6144
      %39 = vsyncadd [#allocation6], %s38
      %s40 = sshll.u32 [#allocation7], 4
      %s41 = int_to_ptr.vmem [resolvable:$true] %s40
      %46 = dma.hbm_to_vmem [thread:$0]  %s3, 6144, %s41, [#allocation6], 384, 384, 24
    $region17: #{tpu_custom_call.1} parent=1 // pred_fallthru
      _
    // Predicated region
    $region18: #{tpu_custom_call.1} parent=1 // pred_check
      _
    $region19: #{tpu_custom_call.1} parent=1 // pred_check_branch
      %48 = sbr.rel (0) target = $region21
    $region20: #{tpu_custom_call.1} parent=1 // pred_region
      _
    $region21: #{tpu_custom_call.1} parent=1 // pred_fallthru
      _
    // Predicated region
    $region22: #{tpu_custom_call.1} parent=1 // pred_check
      _
    $region23: #{tpu_custom_call.1} parent=1 // pred_check_branch
      %50 = sbr.rel (0) target = $region25
    $region24: #{tpu_custom_call.1} parent=1 // pred_region
      %51 = dma.done [#allocation3], 128
    $region25: #{tpu_custom_call.1} parent=1 // pred_fallthru
      _
    // Predicated region
    $region26: #{tpu_custom_call.1} parent=1 // pred_check
      _
    $region27: #{tpu_custom_call.1} parent=1 // pred_check_branch
      %53 = sbr.rel (0) target = $region29
    $region28: #{tpu_custom_call.1} parent=1 // pred_region
      %54 = dma.done [#allocation6], 128
    $region29: #{tpu_custom_call.1} parent=1 // pred_fallthru
      _
    // Predicated region
    $region30: #{tpu_custom_call.1} parent=1 // pred_check
      _
    $region31: #{tpu_custom_call.1} parent=1 // pred_check_branch
      %56 = sbr.rel (0) target = $region33
    $region32: #{tpu_custom_call.1} parent=1 // pred_region
      %57 = dma.done [#allocation6], 6144
    $region33: #{tpu_custom_call.1} parent=1 // pred_fallthru
      _
    %v58 = vld [vmem:[#allocation2] sm:$0xff]
    %v59 = vld [vmem:[#allocation5] sm:$0xff]
    %v60 = vld [vmem:[%s2] sm:$0x1]
    %v62 = vlaneseq
    %v63 = vshrl.u32 %v62, 7
    %v64 = vsub.s32 0, %v63
    %v65 = vrot.slane %v60, %v64
    %vm67 = vcmask 64512
    %v69 = vsel %vm67, %v58, 0
    %71 = vmatprep.subr.mxu0 0.0
    %72 = vmatpush1.msra.mxu0 %v59
    %73 = vmatprep.subr.mxu0 0.0
    %74 = vmatpush1.msra.mxu0 0.0
    %75 = vmatprep.subr.mxu0 0.0
    %76 = vmatpush1.msra.mxu0 0.0
    %77 = vmatprep.subr.mxu0 0.0
    %78 = vmatpush1.msra.mxu0 0.0
    %79 = vmatprep.subr.mxu0 0.0
    %80 = vmatpush1.msra.mxu0 0.0
    %81 = vmatprep.subr.mxu0 0.0
    %82 = vmatpush1.msra.mxu0 0.0
    %83 = vmatprep.subr.mxu0 0.0
    %84 = vmatpush1.msra.mxu0 0.0
    %85 = vmatprep.subr.mxu0 0.0
    %86 = vmatpush1.msra.mxu0 0.0
    %87 = vmatprep.subr.mxu0 0.0
    %88 = vmatpush1.msra.mxu0 0.0
    %89 = vmatprep.subr.mxu0 0.0
    %90 = vmatpush1.msra.mxu0 0.0
    %91 = vmatprep.subr.mxu0 0.0
    %92 = vmatpush1.msra.mxu0 0.0
    %93 = vmatprep.subr.mxu0 0.0
    %94 = vmatpush1.msra.mxu0 0.0
    %95 = vmatprep.subr.mxu0 0.0
    %96 = vmatpush1.msra.mxu0 0.0
    %97 = vmatprep.subr.mxu0 0.0
    %98 = vmatpush1.msra.mxu0 0.0
    %99 = vmatprep.subr.mxu0 0.0
    %100 = vmatpush1.msra.mxu0 0.0
    %101 = vmatprep.subr.mxu0 0.0
    %102 = vmatpush1.msra.mxu0 0.0
    %103 = vmatprep.subr.mxu0 0.0
    %104 = vmatpush1.msra.mxu0 0.0
    %105 = vmatprep.subr.mxu0 0.0
    %106 = vmatpush1.msra.mxu0 0.0
    %107 = vmatprep.subr.mxu0 0.0
    %108 = vmatpush1.msra.mxu0 0.0
    %109 = vmatprep.subr.mxu0 0.0
    %110 = vmatpush1.msra.mxu0 0.0
    %111 = vmatprep.subr.mxu0 0.0
    %112 = vmatpush1.msra.mxu0 0.0
    %113 = vmatprep.subr.mxu0 0.0
    %114 = vmatpush1.msra.mxu0 0.0
    %115 = vmatprep.subr.mxu0 0.0
    %116 = vmatpush1.msra.mxu0 0.0
    %117 = vmatprep.subr.mxu0 0.0
    %118 = vmatpush1.msra.mxu0 0.0
    %119 = vmatprep.subr.mxu0 0.0
    %120 = vmatpush1.msra.mxu0 0.0
    %121 = vmatprep.subr.mxu0 0.0
    %122 = vmatpush1.msra.mxu0 0.0
    %123 = vmatprep.subr.mxu0 0.0
    %124 = vmatpush1.msra.mxu0 0.0
    %125 = vmatprep.subr.mxu0 0.0
    %126 = vmatpush1.msra.mxu0 0.0
    %127 = vmatprep.subr.mxu0 0.0
    %128 = vmatpush1.msra.mxu0 0.0
    %129 = vmatprep.subr.mxu0 0.0
    %130 = vmatpush1.msra.mxu0 0.0
    %131 = vmatprep.subr.mxu0 0.0
    %132 = vmatpush1.msra.mxu0 0.0
    %133 = vmatprep.subr.mxu0 0.0
    %134 = vmatpush1.msra.mxu0 0.0
    %135 = vmatprep.mubr.f32.mxu0 0.0
    %136 = vmatmul.mubr.f32.gmra.mrb[0].mxu0 %v69
    %v137 = vpop.f32.mrb[0].mxu0
    %v138 = vadd.f32 %v65, %v137
    %v139 = vpop.f32.mrb[0].mxu0
    %140 = vdwg.mxu0
    %v141 = vmax.f32 %v138, 0.0
    %v142 = vld [vmem:[#allocation7] sm:$0xff]
    %v143 = vld [vmem:[#allocation7 + $0x8] sm:$0xff]
    %v144 = vld [vmem:[#allocation7 + $0x10] sm:$0xff]
    %v145 = vld [vmem:[#allocation7 + $0x18] sm:$0xff]
    %v146 = vld [vmem:[#allocation7 + $0x20] sm:$0xff]
    %v147 = vld [vmem:[#allocation7 + $0x28] sm:$0xff]
    %v148 = vld [vmem:[#allocation7 + $0x30] sm:$0xff]
    %v149 = vld [vmem:[#allocation7 + $0x38] sm:$0xff]
    %v150 = vld [vmem:[#allocation7 + $0x40] sm:$0xff]
    %v151 = vld [vmem:[#allocation7 + $0x48] sm:$0xff]
    %v152 = vld [vmem:[#allocation7 + $0x50] sm:$0xff]
    %v153 = vld [vmem:[#allocation7 + $0x58] sm:$0xff]
    %v154 = vld [vmem:[#allocation7 + $0x60] sm:$0xff]
    %v155 = vld [vmem:[#allocation7 + $0x68] sm:$0xff]
    %v156 = vld [vmem:[#allocation7 + $0x70] sm:$0xff]
    %v157 = vld [vmem:[#allocation7 + $0x78] sm:$0xff]
    %v158 = vld [vmem:[#allocation7 + $0x80] sm:$0xff]
    %v159 = vld [vmem:[#allocation7 + $0x88] sm:$0xff]
    %v160 = vld [vmem:[#allocation7 + $0x90] sm:$0xff]
    %v161 = vld [vmem:[#allocation7 + $0x98] sm:$0xff]
    %v162 = vld [vmem:[#allocation7 + $0xa0] sm:$0xff]
    %v163 = vld [vmem:[#allocation7 + $0xa8] sm:$0xff]
    %v164 = vld [vmem:[#allocation7 + $0xb0] sm:$0xff]
    %v165 = vld [vmem:[#allocation7 + $0xb8] sm:$0xff]
    %v166 = vld [vmem:[#allocation7 + $0xc0] sm:$0xff]
    %v167 = vld [vmem:[#allocation7 + $0xc8] sm:$0xff]
    %v168 = vld [vmem:[#allocation7 + $0xd0] sm:$0xff]
    %v169 = vld [vmem:[#allocation7 + $0xd8] sm:$0xff]
    %v170 = vld [vmem:[#allocation7 + $0xe0] sm:$0xff]
    %v171 = vld [vmem:[#allocation7 + $0xe8] sm:$0xff]
    %v172 = vld [vmem:[#allocation7 + $0xf0] sm:$0xff]
    %v173 = vld [vmem:[#allocation7 + $0xf8] sm:$0xff]
    %v174 = vld [vmem:[#allocation7 + $0x100] sm:$0xff]
    %v175 = vld [vmem:[#allocation7 + $0x108] sm:$0xff]
    %v176 = vld [vmem:[#allocation7 + $0x110] sm:$0xff]
    %v177 = vld [vmem:[#allocation7 + $0x118] sm:$0xff]
    %v178 = vld [vmem:[#allocation7 + $0x120] sm:$0xff]
    %v179 = vld [vmem:[#allocation7 + $0x128] sm:$0xff]
    %v180 = vld [vmem:[#allocation7 + $0x130] sm:$0xff]
    %v181 = vld [vmem:[#allocation7 + $0x138] sm:$0xff]
    %v182 = vld [vmem:[#allocation7 + $0x140] sm:$0xff]
    %v183 = vld [vmem:[#allocation7 + $0x148] sm:$0xff]
    %v184 = vld [vmem:[#allocation7 + $0x150] sm:$0xff]
    %v185 = vld [vmem:[#allocation7 + $0x158] sm:$0xff]
    %v186 = vld [vmem:[#allocation7 + $0x160] sm:$0xff]
    %v187 = vld [vmem:[#allocation7 + $0x168] sm:$0xff]
    %v188 = vld [vmem:[#allocation7 + $0x170] sm:$0xff]
    %v189 = vld [vmem:[#allocation7 + $0x178] sm:$0xff]
    %v190 = vld [vmem:[%s4] sm:$0x7]
    %v192 = vlaneseq
    %v193 = vshrl.u32 %v192, 7
    %v194 = vsub.s32 0, %v193
    %v195 = vrot.slane %v190, %v194
    %v196 = vlaneseq
    %v197 = vshrl.u32 %v196, 7
    %v198 = vsub.s32 1, %v197
    %v199 = vrot.slane %v190, %v198
    %v200 = vlaneseq
    %v201 = vshrl.u32 %v200, 7
    %v202 = vsub.s32 2, %v201
    %v203 = vrot.slane %v190, %v202
    %207 = vmatprep.subr.mxu0 %v143
    %208 = vmatpush1.msra.mxu0 %v142
    %209 = vmatprep.subr.mxu0 %v146
    %210 = vmatpush1.msra.mxu0 %v145
    %211 = vmatprep.subr.mxu0 %v149
    %212 = vmatpush1.msra.mxu0 %v148
    %213 = vmatprep.subr.mxu0 %v152
    %214 = vmatpush1.msra.mxu0 %v151
    %215 = vmatprep.subr.mxu0 %v155
    %216 = vmatpush1.msra.mxu0 %v154
    %217 = vmatprep.subr.mxu0 %v158
    %218 = vmatpush1.msra.mxu0 %v157
    %219 = vmatprep.subr.mxu0 %v161
    %220 = vmatpush1.msra.mxu0 %v160
    %221 = vmatprep.subr.mxu0 %v164
    %222 = vmatpush1.msra.mxu0 %v163
    %223 = vmatprep.subr.mxu0 %v167
    %224 = vmatpush1.msra.mxu0 %v166
    %225 = vmatprep.subr.mxu0 %v170
    %226 = vmatpush1.msra.mxu0 %v169
    %227 = vmatprep.subr.mxu0 %v173
    %228 = vmatpush1.msra.mxu0 %v172
    %229 = vmatprep.subr.mxu0 %v176
    %230 = vmatpush1.msra.mxu0 %v175
    %231 = vmatprep.subr.mxu0 %v179
    %232 = vmatpush1.msra.mxu0 %v178
    %233 = vmatprep.subr.mxu0 %v182
    %234 = vmatpush1.msra.mxu0 %v181
    %235 = vmatprep.subr.mxu0 %v185
    %236 = vmatpush1.msra.mxu0 %v184
    %237 = vmatprep.subr.mxu0 %v188
    %238 = vmatpush1.msra.mxu0 %v187
    %239 = vmatprep.subr.mxu0 0.0
    %240 = vmatpush1.msra.mxu0 0.0
    %241 = vmatprep.subr.mxu0 0.0
    %242 = vmatpush1.msra.mxu0 0.0
    %243 = vmatprep.subr.mxu0 0.0
    %244 = vmatpush1.msra.mxu0 0.0
    %245 = vmatprep.subr.mxu0 0.0
    %246 = vmatpush1.msra.mxu0 0.0
    %247 = vmatprep.subr.mxu0 0.0
    %248 = vmatpush1.msra.mxu0 0.0
    %249 = vmatprep.subr.mxu0 0.0
    %250 = vmatpush1.msra.mxu0 0.0
    %251 = vmatprep.subr.mxu0 0.0
    %252 = vmatpush1.msra.mxu0 0.0
    %253 = vmatprep.subr.mxu0 0.0
    %254 = vmatpush1.msra.mxu0 0.0
    %255 = vmatprep.subr.mxu0 0.0
    %256 = vmatpush1.msra.mxu0 0.0
    %257 = vmatprep.subr.mxu0 0.0
    %258 = vmatpush1.msra.mxu0 0.0
    %259 = vmatprep.subr.mxu0 0.0
    %260 = vmatpush1.msra.mxu0 0.0
    %261 = vmatprep.subr.mxu0 0.0
    %262 = vmatpush1.msra.mxu0 0.0
    %263 = vmatprep.subr.mxu0 0.0
    %264 = vmatpush1.msra.mxu0 0.0
    %265 = vmatprep.subr.mxu0 0.0
    %266 = vmatpush1.msra.mxu0 0.0
    %267 = vmatprep.subr.mxu0 0.0
    %268 = vmatpush1.msra.mxu0 0.0
    %269 = vmatprep.subr.mxu0 0.0
    %270 = vmatpush1.msra.mxu0 0.0
    %271 = vmatprep.mubr.f32.mxu0 0.0
    %272 = vmatmul.mubr.f32.gmra.mrb[0].mxu0 %v141
    %v273 = vpop.f32.mrb[0].mxu0
    %v274 = vadd.f32 %v195, %v273
    %v275 = vpop.f32.mrb[0].mxu0
    %v276 = vadd.f32 %v199, %v275
    %277 = vdwg.mxu0
    %278 = vmatprep.subr.mxu0 0.0
    %279 = vmatpush1.msra.mxu0 %v144
    %280 = vmatprep.subr.mxu0 0.0
    %281 = vmatpush1.msra.mxu0 %v147
    %282 = vmatprep.subr.mxu0 0.0
    %283 = vmatpush1.msra.mxu0 %v150
    %284 = vmatprep.subr.mxu0 0.0
    %285 = vmatpush1.msra.mxu0 %v153
    %286 = vmatprep.subr.mxu0 0.0
    %287 = vmatpush1.msra.mxu0 %v156
    %288 = vmatprep.subr.mxu0 0.0
    %289 = vmatpush1.msra.mxu0 %v159
    %290 = vmatprep.subr.mxu0 0.0
    %291 = vmatpush1.msra.mxu0 %v162
    %292 = vmatprep.subr.mxu0 0.0
    %293 = vmatpush1.msra.mxu0 %v165
    %294 = vmatprep.subr.mxu0 0.0
    %295 = vmatpush1.msra.mxu0 %v168
    %296 = vmatprep.subr.mxu0 0.0
    %297 = vmatpush1.msra.mxu0 %v171
    %298 = vmatprep.subr.mxu0 0.0
    %299 = vmatpush1.msra.mxu0 %v174
    %300 = vmatprep.subr.mxu0 0.0
    %301 = vmatpush1.msra.mxu0 %v177
    %302 = vmatprep.subr.mxu0 0.0
    %303 = vmatpush1.msra.mxu0 %v180
    %304 = vmatprep.subr.mxu0 0.0
    %305 = vmatpush1.msra.mxu0 %v183
    %306 = vmatprep.subr.mxu0 0.0
    %307 = vmatpush1.msra.mxu0 %v186
    %308 = vmatprep.subr.mxu0 0.0
    %309 = vmatpush1.msra.mxu0 %v189
    %310 = vmatprep.subr.mxu0 0.0
    %311 = vmatpush1.msra.mxu0 0.0
    %312 = vmatprep.subr.mxu0 0.0
    %313 = vmatpush1.msra.mxu0 0.0
    %314 = vmatprep.subr.mxu0 0.0
    %315 = vmatpush1.msra.mxu0 0.0
    %316 = vmatprep.subr.mxu0 0.0
    %317 = vmatpush1.msra.mxu0 0.0
    %318 = vmatprep.subr.mxu0 0.0
    %319 = vmatpush1.msra.mxu0 0.0
    %320 = vmatprep.subr.mxu0 0.0
    %321 = vmatpush1.msra.mxu0 0.0
    %322 = vmatprep.subr.mxu0 0.0
    %323 = vmatpush1.msra.mxu0 0.0
    %324 = vmatprep.subr.mxu0 0.0
    %325 = vmatpush1.msra.mxu0 0.0
    %326 = vmatprep.subr.mxu0 0.0
    %327 = vmatpush1.msra.mxu0 0.0
    %328 = vmatprep.subr.mxu0 0.0
    %329 = vmatpush1.msra.mxu0 0.0
    %330 = vmatprep.subr.mxu0 0.0
    %331 = vmatpush1.msra.mxu0 0.0
    %332 = vmatprep.subr.mxu0 0.0
    %333 = vmatpush1.msra.mxu0 0.0
    %334 = vmatprep.subr.mxu0 0.0
    %335 = vmatpush1.msra.mxu0 0.0
    %336 = vmatprep.subr.mxu0 0.0
    %337 = vmatpush1.msra.mxu0 0.0
    %338 = vmatprep.subr.mxu0 0.0
    %339 = vmatpush1.msra.mxu0 0.0
    %340 = vmatprep.subr.mxu0 0.0
    %341 = vmatpush1.msra.mxu0 0.0
    %342 = vmatprep.mubr.f32.mxu0 0.0
    %343 = vmatmul.mubr.f32.gmra.mrb[0].mxu0 %v141
    %v344 = vpop.f32.mrb[0].mxu0
    %v345 = vadd.f32 %v203, %v344
    %v346 = vpop.f32.mrb[0].mxu0
    %347 = vdwg.mxu0
    %348 = vst [vmem:[#allocation8] sm:$0xff] %v274
    %349 = vst [vmem:[#allocation8 + $0x8] sm:$0xff] %v276
    %350 = vst [vmem:[#allocation8 + $0x10] sm:$0xff] %v345
    // Predicated region
    $region34: #{tpu_custom_call.1} parent=1 // pred_check
      _
    $region35: #{tpu_custom_call.1} parent=1 // pred_check_branch
      %352 = sbr.rel (0) target = $region37
    $region36: #{tpu_custom_call.1} parent=1 // pred_region
      %s354 = ssub.s32 384, 384
      %355 = vsyncadd [#allocation4], %s354
      %s357 = sshll.u32 [#allocation8], 4
      %s358 = int_to_ptr.vmem [resolvable:$true] %s357
      %360 = dma.vmem_to_hbm [thread:$0]  %s358, 384, %s5, [#allocation4]
    $region37: #{tpu_custom_call.1} parent=1 // pred_fallthru
      _
    // Predicated region
    $region38: #{tpu_custom_call.1} parent=1 // pred_check
      _
    $region39: #{tpu_custom_call.1} parent=1 // pred_check_branch
      %362 = sbr.rel (0) target = $region41
    $region40: #{tpu_custom_call.1} parent=1 // pred_region
      %363 = dma.done [#allocation4], 384
    $region41: #{tpu_custom_call.1} parent=1 // pred_fallthru
      _
    %364 = vsyncpa [#allocation3], 1
    %365 = vsyncpa [#allocation6], 1
    %366 = vsyncpa [#allocation4], 1

</llo_original>
